<compile_context>
chip_gen: v6e
topology: v6e:2x2x1
jax: 0.10.0
libtpu: 0.0.40
codegen_flags: <defaults>
</compile_context>

<pallas_src>
import functools

import jax
import jax.numpy as jnp
from jax.experimental import pallas as pl
from jax.experimental.pallas import tpu as pltpu


def _round_up(x: int, m: int) -> int:
    return ((x + m - 1) // m) * m


def _choose_tile_n(n: int, d: int, *, max_tile: int = 1024,
                   x_tile_budget_bytes: int = 16 << 20) -> int:
    """Pick a node-tile size: as large as sensible, bounded by a VMEM budget for the
    double-buffered f32 x tile (keeps us safe on v7x's smaller 64 MiB VMEM)."""
    cap = max(8, ((x_tile_budget_bytes // (2 * 4 * max(d, 1))) // 8) * 8)
    tile = min(max_tile, cap, _round_up(max(n, 1), 8))
    return max(8, tile)


def _sum_readout_kernel(starts_ref, ends_ref, x_ref, w1_ref, b1_ref,
                        w2_ref, b2_ref, out_ref, acc_ref):
    k = pl.program_id(0)
    G = starts_ref.shape[0]
    TILE_N = x_ref.shape[0]

    @pl.when(k == 0)
    def _():
        acc_ref[...] = jnp.zeros_like(acc_ref)

    # Membership mask for this node tile: [G_pad, TILE_N].
    base = k * TILE_N
    node_ids = base + jax.lax.broadcasted_iota(jnp.int32, (G, TILE_N), 1)
    member = (node_ids >= starts_ref[...]) & (node_ids <= ends_ref[...])
    sel = member.astype(jnp.float32)               # float operand for the MXU (v7x-safe)

    # Partial segment sum via MXU: [G_pad, TILE_N] @ [TILE_N, D] -> [G_pad, D]
    x_tile = x_ref[...].astype(jnp.float32)
    acc_ref[...] += jnp.dot(sel, x_tile, preferred_element_type=jnp.float32)

    # On the last reduction step, run the fused MLP and store the (lane-dense) output.
    @pl.when(k == pl.num_programs(0) - 1)
    def _():
        agg = acc_ref[...]                                                   # [G_pad, D] f32
        h = jnp.dot(agg, w1_ref[...].astype(jnp.float32),
                    preferred_element_type=jnp.float32) + b1_ref[...].astype(jnp.float32)
        # mish(x) = x * tanh(softplus(x)), numerically safe softplus.
        sp = jnp.log1p(jnp.exp(-jnp.abs(h))) + jnp.maximum(h, 0.0)
        h = h * jnp.tanh(sp)
        out = jnp.dot(h, w2_ref[...].astype(jnp.float32),
                      preferred_element_type=jnp.float32) + b2_ref[...].astype(jnp.float32)
        out_ref[...] = out.astype(out_ref.dtype)


def sum_readout(node_embeddings, node_sizes, w1, b1, w2, b2, *, tile_n=None):
    """SumReadout forward: per-graph sum of node embeddings followed by Linear->mish->Linear.

    node_embeddings: [N, D]; node_sizes: [G] (sum(node_sizes) == N); w1: [D, D]; b1: [1, D];
    w2: [D, O]; b2: [1, O]. Returns [G, O].
    """
    N, D = node_embeddings.shape
    G = node_sizes.shape[0]
    O = w2.shape[1]

    G_pad = _round_up(G, 8)          # sublane-pad the graph axis
    O_pad = _round_up(O, 128)        # lane-pad the output feature axis (unmasked stores)

    if tile_n is None:
        tile_n = _choose_tile_n(N, D)
    tile_n = max(8, _round_up(int(tile_n), 8))
    N_pad = _round_up(max(N, 1), tile_n)
    n_steps = N_pad // tile_n

    # Per-graph inclusive [start, end] node index ranges (empty graphs => start > end).
    sizes = node_sizes.astype(jnp.int32)
    ends = jnp.cumsum(sizes) - 1                                   # [G]
    starts = ends - sizes + 1                                      # [G]
    starts_p = jnp.full((G_pad,), N_pad, dtype=jnp.int32).at[:G].set(starts)
    ends_p = jnp.full((G_pad,), -1, dtype=jnp.int32).at[:G].set(ends)
    starts_2d = starts_p.reshape(G_pad, 1)
    ends_2d = ends_p.reshape(G_pad, 1)

    # Pad the node axis so the grid tiles evenly; padded rows are never selected
    # (all ends < N).  NOTE: rows in node_embeddings beyond sum(node_sizes) are dropped,
    # matching the reference semantics.
    x = node_embeddings
    if N_pad != N:
        x = jnp.pad(x, ((0, N_pad - N), (0, 0)))

    # Lane-pad the outer linear to O_pad (zeros; sliced off below).
    w2_p = jnp.pad(w2, ((0, 0), (0, O_pad - O))) if O_pad != O else w2
    b2_p = jnp.pad(b2, ((0, 0), (0, O_pad - O))) if O_pad != O else b2

    itemsize = jnp.dtype(node_embeddings.dtype).itemsize
    # VMEM estimate: double-buffered x tile + resident weights + accumulator + output + masks.
    needed = (2 * tile_n * D * itemsize
              + (D * D + D) * jnp.dtype(w1.dtype).itemsize
              + (D * O_pad + O_pad) * jnp.dtype(w2_p.dtype).itemsize
              + G_pad * D * 4
              + 2 * G_pad * O_pad * itemsize
              + 4 * G_pad * 4
              + G_pad * tile_n * 8)
    vmem_limit = int(min(64 * 1024 * 1024, max(2 * needed, 8 * 1024 * 1024)))

    cost = pl.CostEstimate(
        flops=2 * G_pad * N_pad * D + 2 * G_pad * D * D + 2 * G_pad * D * O_pad,
        transcendentals=3 * G_pad * D,
        bytes_accessed=(N_pad * D * itemsize
                        + (D * D + D + D * O_pad + O_pad) * 4
                        + G_pad * O_pad * itemsize),
    )

    const = lambda k: (0, 0)   # resident across the reduction (loaded once)

    out = pl.pallas_call(
        _sum_readout_kernel,
        out_shape=jax.ShapeDtypeStruct((G_pad, O_pad), node_embeddings.dtype),
        grid=(n_steps,),
        in_specs=[
            pl.BlockSpec((G_pad, 1), const),          # starts
            pl.BlockSpec((G_pad, 1), const),          # ends
            pl.BlockSpec((tile_n, D), lambda k: (k, 0)),   # x (streamed / pipelined)
            pl.BlockSpec((D, D), const),              # w1
            pl.BlockSpec((1, D), const),              # b1
            pl.BlockSpec((D, O_pad), const),          # w2 (lane-padded)
            pl.BlockSpec((1, O_pad), const),          # b2 (lane-padded)
        ],
        out_specs=pl.BlockSpec((G_pad, O_pad), const),
        scratch_shapes=[pltpu.VMEM((G_pad, D), jnp.float32)],
        compiler_params=pltpu.CompilerParams(
            dimension_semantics=("arbitrary",),
            vmem_limit_bytes=vmem_limit,
        ),
        cost_estimate=cost,
    )(starts_2d, ends_2d, x, w1, b1, w2_p, b2_p)

    return out[:G, :O]


def _reference(node_embeddings, node_sizes, w1, b1, w2, b2):
    # Mirrors the PyTorch forward exactly (cumsum + gather + diff, then MLP).
    cumsum_indices = jnp.cumsum(node_sizes) - 1
    cumsum_states = jnp.cumsum(node_embeddings, axis=0)[cumsum_indices]
    agg = jnp.concatenate(
        [cumsum_states[0:1], cumsum_states[1:] - cumsum_states[:-1]], axis=0)
    h = agg @ w1 + b1
    h = h * jnp.tanh(jax.nn.softplus(h))
    return h @ w2 + b2


if __name__ == "__main__":
    input_size = 32     # D
    output_size = 8     # O

    key = jax.random.PRNGKey(0)
    k_x, k_w1, k_b1, k_w2, k_b2, k_x2 = jax.random.split(key, 6)

    # Deterministic nn.Linear-style init (uniform in +-1/sqrt(fan_in)).
    bound1 = 1.0 / jnp.sqrt(input_size)
    w1 = jax.random.uniform(k_w1, (input_size, input_size),
                            minval=-bound1, maxval=bound1, dtype=jnp.float32)
    b1 = jax.random.uniform(k_b1, (1, input_size),
                            minval=-bound1, maxval=bound1, dtype=jnp.float32)
    w2 = jax.random.uniform(k_w2, (input_size, output_size),
                            minval=-bound1, maxval=bound1, dtype=jnp.float32)
    b2 = jax.random.uniform(k_b2, (1, output_size),
                            minval=-bound1, maxval=bound1, dtype=jnp.float32)

    # --- Test 1: single grid step (small batch of graphs) ---
    node_sizes = jnp.array([5, 7, 3, 9], dtype=jnp.int32)           # G = 4 graphs
    N = int(node_sizes.sum())                                       # 24 nodes total
    node_embeddings = jax.random.normal(k_x, (N, input_size), dtype=jnp.float32)

    out = sum_readout(node_embeddings, node_sizes, w1, b1, w2, b2)
    out = jax.block_until_ready(out)
    ref = _reference(node_embeddings, node_sizes, w1, b1, w2, b2)
    assert out.shape == (node_sizes.shape[0], output_size)
    assert jnp.allclose(out, ref, atol=1e-4, rtol=1e-4), "mismatch vs reference (test 1)"

    # --- Test 2: multi-step reduction (forced small tile) + an empty graph ---
    node_sizes2 = jnp.array([5, 0, 7, 3, 9, 6], dtype=jnp.int32)    # G = 6 graphs
    N2 = int(node_sizes2.sum())                                     # 30 nodes total
    node_embeddings2 = jax.random.normal(k_x2, (N2, input_size), dtype=jnp.float32)

    out2 = sum_readout(node_embeddings2, node_sizes2, w1, b1, w2, b2, tile_n=8)
    out2 = jax.block_until_ready(out2)
    ref2 = _reference(node_embeddings2, node_sizes2, w1, b1, w2, b2)
    assert out2.shape == (node_sizes2.shape[0], output_size)
    assert jnp.allclose(out2, ref2, atol=1e-4, rtol=1e-4), "mismatch vs reference (test 2)"

    print("KERNEL_OK")
</pallas_src>

<mosaic_0001>
module attributes {stable_mosaic.version = 11 : i64} {
  func.func @_sum_readout_kernel(%arg0: i32, %arg1: memref<8x1xi32, #tpu.memory_space<vmem>>, %arg2: memref<8x1xi32, #tpu.memory_space<vmem>>, %arg3: memref<24x32xf32, #tpu.memory_space<vmem>>, %arg4: memref<32x32xf32, #tpu.memory_space<vmem>>, %arg5: memref<1x32xf32, #tpu.memory_space<vmem>>, %arg6: memref<32x128xf32, #tpu.memory_space<vmem>>, %arg7: memref<1x128xf32, #tpu.memory_space<vmem>>, %arg8: memref<8x128xf32, #tpu.memory_space<vmem>>, %arg9: memref<8x32xf32, #tpu.memory_space<vmem>>) attributes {dimension_semantics = [#tpu.dimension_semantics<arbitrary>], iteration_bounds = array<i64: 1>, scalar_prefetch = 0 : i64, scratch_operands = 1 : i64, tpu.core_type = #tpu.core_type<tc>, window_params = [{pipeline_mode = #tpu.pipeline_mode<synchronous>, transform_indices = @transform_0, window_bounds = array<i64: 8, 1>}, {pipeline_mode = #tpu.pipeline_mode<synchronous>, transform_indices = @transform_1, window_bounds = array<i64: 8, 1>}, {transform_indices = @transform_2, window_bounds = array<i64: 24, 32>}, {pipeline_mode = #tpu.pipeline_mode<synchronous>, transform_indices = @transform_3, window_bounds = array<i64: 32, 32>}, {pipeline_mode = #tpu.pipeline_mode<synchronous>, transform_indices = @transform_4, window_bounds = array<i64: 1, 32>}, {pipeline_mode = #tpu.pipeline_mode<synchronous>, transform_indices = @transform_5, window_bounds = array<i64: 32, 128>}, {pipeline_mode = #tpu.pipeline_mode<synchronous>, transform_indices = @transform_6, window_bounds = array<i64: 1, 128>}, {pipeline_mode = #tpu.pipeline_mode<synchronous>, transform_indices = @transform_7, window_bounds = array<i64: 8, 128>}]} {
    %c0_i32 = arith.constant 0 : i32
    %0 = arith.cmpi eq, %arg0, %c0_i32 : i32
    %1 = arith.extui %0 : i1 to i32
    %c0_i32_0 = arith.constant 0 : i32
    %2 = arith.cmpi ne, %1, %c0_i32_0 : i32
    scf.if %2 {
      %cst_12 = arith.constant 0.000000e+00 : f32
      %24 = vector.broadcast %cst_12 : f32 to vector<8x32xf32>
      %c0_13 = arith.constant 0 : index
      %c0_14 = arith.constant 0 : index
      %25 = vector.load %arg9[%c0_13, %c0_14] : memref<8x32xf32, #tpu.memory_space<vmem>>, vector<8x32xf32>
      tpu.vector_store %arg9[%c0_13, %c0_14], %24 {strides = array<i32>} : memref<8x32xf32, #tpu.memory_space<vmem>>, vector<8x32xf32>,
    } else {
    }
    %c24_i32 = arith.constant 24 : i32
    %3 = arith.muli %arg0, %c24_i32 : i32
    %4 = tpu.iota {dimensions = array<i32: 1>} : vector<8x24xi32>
    %5 = vector.broadcast %3 : i32 to vector<8x24xi32>
    %6 = arith.addi %5, %4 : vector<8x24xi32>
    %c0 = arith.constant 0 : index
    %c0_1 = arith.constant 0 : index
    %7 = vector.load %arg1[%c0, %c0_1] : memref<8x1xi32, #tpu.memory_space<vmem>>, vector<8x1xi32>
    %8 = vector.broadcast %7 : vector<8x1xi32> to vector<8x24xi32>
    %9 = arith.cmpi sge, %6, %8 : vector<8x24xi32>
    %c0_2 = arith.constant 0 : index
    %c0_3 = arith.constant 0 : index
    %10 = vector.load %arg2[%c0_2, %c0_3] : memref<8x1xi32, #tpu.memory_space<vmem>>, vector<8x1xi32>
    %11 = vector.broadcast %10 : vector<8x1xi32> to vector<8x24xi32>
    %12 = arith.cmpi sle, %6, %11 : vector<8x24xi32>
    %13 = arith.andi %9, %12 : vector<8x24xi1>
    %14 = arith.extui %13 : vector<8x24xi1> to vector<8x24xi32>
    %15 = arith.sitofp %14 : vector<8x24xi32> to vector<8x24xf32>
    %c0_4 = arith.constant 0 : index
    %c0_5 = arith.constant 0 : index
    %16 = vector.load %arg3[%c0_4, %c0_5] : memref<24x32xf32, #tpu.memory_space<vmem>>, vector<24x32xf32>
    %c0_6 = arith.constant 0 : index
    %c0_7 = arith.constant 0 : index
    %17 = vector.load %arg9[%c0_6, %c0_7] : memref<8x32xf32, #tpu.memory_space<vmem>>, vector<8x32xf32>
    %cst = arith.constant dense<0.000000e+00> : vector<8x32xf32>
    %18 = tpu.matmul %15, %16, %cst {dimension_numbers = #tpu.dot_dimension_numbers<[1], [0], [0], [1], [0, 0, 1, 1], [], []>} : vector<8x24xf32>, vector<24x32xf32>, vector<8x32xf32> -> vector<8x32xf32>
    %19 = arith.addf %17, %18 : vector<8x32xf32>
    %c0_8 = arith.constant 0 : index
    %c0_9 = arith.constant 0 : index
    %20 = vector.load %arg9[%c0_8, %c0_9] : memref<8x32xf32, #tpu.memory_space<vmem>>, vector<8x32xf32>
    tpu.vector_store %arg9[%c0_8, %c0_9], %19 {strides = array<i32>} : memref<8x32xf32, #tpu.memory_space<vmem>>, vector<8x32xf32>,
    %c0_i32_10 = arith.constant 0 : i32
    %21 = arith.cmpi eq, %arg0, %c0_i32_10 : i32
    %22 = arith.extui %21 : i1 to i32
    %c0_i32_11 = arith.constant 0 : i32
    %23 = arith.cmpi ne, %22, %c0_i32_11 : i32
    scf.if %23 {
      %c0_12 = arith.constant 0 : index
      %c0_13 = arith.constant 0 : index
      %24 = vector.load %arg9[%c0_12, %c0_13] : memref<8x32xf32, #tpu.memory_space<vmem>>, vector<8x32xf32>
      %c0_14 = arith.constant 0 : index
      %c0_15 = arith.constant 0 : index
      %25 = vector.load %arg4[%c0_14, %c0_15] : memref<32x32xf32, #tpu.memory_space<vmem>>, vector<32x32xf32>
      %cst_16 = arith.constant dense<0.000000e+00> : vector<8x32xf32>
      %26 = tpu.matmul %24, %25, %cst_16 {dimension_numbers = #tpu.dot_dimension_numbers<[1], [0], [0], [1], [0, 0, 1, 1], [], []>} : vector<8x32xf32>, vector<32x32xf32>, vector<8x32xf32> -> vector<8x32xf32>
      %c0_17 = arith.constant 0 : index
      %c0_18 = arith.constant 0 : index
      %27 = vector.load %arg5[%c0_17, %c0_18] : memref<1x32xf32, #tpu.memory_space<vmem>>, vector<1x32xf32>
      %28 = vector.broadcast %27 : vector<1x32xf32> to vector<8x32xf32>
      %29 = arith.addf %26, %28 : vector<8x32xf32>
      %30 = math.absf %29 : vector<8x32xf32>
      %cst_19 = arith.constant 0.000000e+00 : f32
      %31 = vector.broadcast %cst_19 : f32 to vector<8x32xf32>
      %32 = arith.subf %31, %30 : vector<8x32xf32>
      %33 = math.exp %32 : vector<8x32xf32>
      %34 = math.log1p %33 : vector<8x32xf32>
      %cst_20 = arith.constant 0.000000e+00 : f32
      %35 = vector.broadcast %cst_20 : f32 to vector<8x32xf32>
      %36 = arith.maximumf %29, %35 : vector<8x32xf32>
      %37 = arith.addf %34, %36 : vector<8x32xf32>
      %38 = math.tanh %37 : vector<8x32xf32>
      %39 = arith.mulf %29, %38 : vector<8x32xf32>
      %c0_21 = arith.constant 0 : index
      %c0_22 = arith.constant 0 : index
      %40 = vector.load %arg6[%c0_21, %c0_22] : memref<32x128xf32, #tpu.memory_space<vmem>>, vector<32x128xf32>
      %cst_23 = arith.constant dense<0.000000e+00> : vector<8x128xf32>
      %41 = tpu.matmul %39, %40, %cst_23 {dimension_numbers = #tpu.dot_dimension_numbers<[1], [0], [0], [1], [0, 0, 1, 1], [], []>} : vector<8x32xf32>, vector<32x128xf32>, vector<8x128xf32> -> vector<8x128xf32>
      %c0_24 = arith.constant 0 : index
      %c0_25 = arith.constant 0 : index
      %42 = vector.load %arg7[%c0_24, %c0_25] : memref<1x128xf32, #tpu.memory_space<vmem>>, vector<1x128xf32>
      %43 = vector.broadcast %42 : vector<1x128xf32> to vector<8x128xf32>
      %44 = arith.addf %41, %43 : vector<8x128xf32>
      %c0_26 = arith.constant 0 : index
      %c0_27 = arith.constant 0 : index
      %45 = vector.load %arg8[%c0_26, %c0_27] : memref<8x128xf32, #tpu.memory_space<vmem>>, vector<8x128xf32>
      tpu.vector_store %arg8[%c0_26, %c0_27], %44 {strides = array<i32>} : memref<8x128xf32, #tpu.memory_space<vmem>>, vector<8x128xf32>,
    } else {
    }
    return
  }
  func.func @transform_0(%arg0: i32) -> (i32, i32) {
    %c0_i32 = arith.constant 0 : i32
    %c0_i32_0 = arith.constant 0 : i32
    %c0_i32_1 = arith.constant 0 : i32
    return %c0_i32, %c0_i32_0 : i32, i32
  }
  func.func @transform_1(%arg0: i32) -> (i32, i32) {
    %c0_i32 = arith.constant 0 : i32
    %c0_i32_0 = arith.constant 0 : i32
    %c0_i32_1 = arith.constant 0 : i32
    return %c0_i32, %c0_i32_0 : i32, i32
  }
  func.func @transform_2(%arg0: i32) -> (i32, i32) {
    %c0_i32 = arith.constant 0 : i32
    %c0_i32_0 = arith.constant 0 : i32
    return %arg0, %c0_i32 : i32, i32
  }
  func.func @transform_3(%arg0: i32) -> (i32, i32) {
    %c0_i32 = arith.constant 0 : i32
    %c0_i32_0 = arith.constant 0 : i32
    %c0_i32_1 = arith.constant 0 : i32
    return %c0_i32, %c0_i32_0 : i32, i32
  }
  func.func @transform_4(%arg0: i32) -> (i32, i32) {
    %c0_i32 = arith.constant 0 : i32
    %c0_i32_0 = arith.constant 0 : i32
    %c0_i32_1 = arith.constant 0 : i32
    return %c0_i32, %c0_i32_0 : i32, i32
  }
  func.func @transform_5(%arg0: i32) -> (i32, i32) {
    %c0_i32 = arith.constant 0 : i32
    %c0_i32_0 = arith.constant 0 : i32
    %c0_i32_1 = arith.constant 0 : i32
    return %c0_i32, %c0_i32_0 : i32, i32
  }
  func.func @transform_6(%arg0: i32) -> (i32, i32) {
    %c0_i32 = arith.constant 0 : i32
    %c0_i32_0 = arith.constant 0 : i32
    %c0_i32_1 = arith.constant 0 : i32
    return %c0_i32, %c0_i32_0 : i32, i32
  }
  func.func @transform_7(%arg0: i32) -> (i32, i32) {
    %c0_i32 = arith.constant 0 : i32
    %c0_i32_0 = arith.constant 0 : i32
    %c0_i32_1 = arith.constant 0 : i32
    return %c0_i32, %c0_i32_0 : i32, i32
  }
}

</mosaic_0001>

<llo_original>
// kernel: tpu_custom_call.1
$region0: #{tpu_custom_call.1}
  #allocation0 [shape = 'u32[]', space=smem, size = 0x4, offset = 0x4, fixed_abs, tag = 'smem constant byte address 0x4 - core index']
  #allocation1 [shape = 'u32[144,128]{1,0:T(1,128)}', space=vmem, size = 0x12000, scoped, tag = 'internal scratch']
  #allocation2 [shape = 'f32[8,32]{1,0:T(8,128)}', space=vmem, size = 0x1000, scoped, tag = 'scratch operand']
  %s0 = inlined_call_operand.vmem [shape: s32[8,1], index: 0, kind: input, shape index: {}]
  %s1 = inlined_call_operand.vmem [shape: s32[8,1], index: 1, kind: input, shape index: {}]
  %s2 = inlined_call_operand.hbm [shape: f32[24,32], index: 2, kind: input, shape index: {}]
  %s3 = inlined_call_operand.hbm [shape: f32[32,32], index: 3, kind: input, shape index: {}]
  %s4 = inlined_call_operand.vmem [shape: f32[1,32], index: 4, kind: input, shape index: {}]
  %s5 = inlined_call_operand.hbm [shape: f32[32,128], index: 5, kind: input, shape index: {}]
  %s6 = inlined_call_operand.vmem [shape: f32[1,128], index: 6, kind: input, shape index: {}]
  %s7 = inlined_call_operand.hbm [shape: f32[8,128], index: 7, kind: output, shape index: {}]
  %s8 = sld [smem:[#allocation0]]
  $region58: #{tpu_custom_call.1} parent=0
    _
  %s10 = ssub.s32 1, %s8
  %s11 = scalar_select 0, %s10, %s8
  $region1: #{tpu_custom_call.1} parent=0
    #allocation3 [shape = 'u8[12288]{0}', space=vmem, size = 0x3000, scoped, tag = 'input window, operand 2, single buffered']
    #allocation4 [shape = 's32[1]{0}', space=sflag, size = 0x4, scoped, tag = 'scoped memory for tpu_custom_call.1']
    #allocation5 [shape = 's32[1]{0}', space=sflag, size = 0x4, scoped, tag = 'scoped memory for tpu_custom_call.1']
    #allocation6 [shape = 'u8[16384]{0}', space=vmem, size = 0x4000, scoped, tag = 'input window, operand 3, single buffered']
    #allocation7 [shape = 's32[1]{0}', space=sflag, size = 0x4, scoped, tag = 'scoped memory for tpu_custom_call.1']
    #allocation8 [shape = 'u8[16384]{0}', space=vmem, size = 0x4000, scoped, tag = 'input window, operand 5, single buffered']
    #allocation9 [shape = 'u8[4096]{0}', space=vmem, size = 0x1000, scoped, tag = 'output window, operand 0, single buffered']
    %12 = vsyncpa [#allocation4], 0
    %13 = vsyncpa [#allocation7], 0
    %14 = vsyncpa [#allocation5], 0
    // Predicated region
    $region2: #{tpu_custom_call.1} parent=1 // pred_check
      _
    $region3: #{tpu_custom_call.1} parent=1 // pred_check_branch
      %16 = sbr.rel (0) target = $region5
    $region4: #{tpu_custom_call.1} parent=1 // pred_region
      _
    $region5: #{tpu_custom_call.1} parent=1 // pred_fallthru
      _
    // Predicated region
    $region6: #{tpu_custom_call.1} parent=1 // pred_check
      _
    $region7: #{tpu_custom_call.1} parent=1 // pred_check_branch
      %18 = sbr.rel (0) target = $region9
    $region8: #{tpu_custom_call.1} parent=1 // pred_region
      _
    $region9: #{tpu_custom_call.1} parent=1 // pred_fallthru
      _
    // Predicated region
    $region10: #{tpu_custom_call.1} parent=1 // pred_check
      _
    $region11: #{tpu_custom_call.1} parent=1 // pred_check_branch
      %20 = sbr.rel (0) target = $region13
    $region12: #{tpu_custom_call.1} parent=1 // pred_region
      %s22 = ssub.s32 384, 384
      %23 = vsyncadd [#allocation4], %s22
      %s24 = sshll.u32 [#allocation3], 4
      %s25 = int_to_ptr.vmem [resolvable:$true] %s24
      %30 = dma.hbm_to_vmem [thread:$0]  %s2, 384, %s25, [#allocation4], 128, 128, 8
    $region13: #{tpu_custom_call.1} parent=1 // pred_fallthru
      _
    // Predicated region
    $region14: #{tpu_custom_call.1} parent=1 // pred_check
      _
    $region15: #{tpu_custom_call.1} parent=1 // pred_check_branch
      %32 = sbr.rel (0) target = $region17
    $region16: #{tpu_custom_call.1} parent=1 // pred_region
      %s34 = ssub.s32 512, 512
      %35 = vsyncadd [#allocation7], %s34
      %s36 = sshll.u32 [#allocation6], 4
      %s37 = int_to_ptr.vmem [resolvable:$true] %s36
      %42 = dma.hbm_to_vmem [thread:$0]  %s3, 512, %s37, [#allocation7], 128, 128, 8
    $region17: #{tpu_custom_call.1} parent=1 // pred_fallthru
      _
    // Predicated region
    $region18: #{tpu_custom_call.1} parent=1 // pred_check
      _
    $region19: #{tpu_custom_call.1} parent=1 // pred_check_branch
      %44 = sbr.rel (0) target = $region21
    $region20: #{tpu_custom_call.1} parent=1 // pred_region
      _
    $region21: #{tpu_custom_call.1} parent=1 // pred_fallthru
      _
    // Predicated region
    $region22: #{tpu_custom_call.1} parent=1 // pred_check
      _
    $region23: #{tpu_custom_call.1} parent=1 // pred_check_branch
      %46 = sbr.rel (0) target = $region25
    $region24: #{tpu_custom_call.1} parent=1 // pred_region
      %s48 = ssub.s32 512, 512
      %49 = vsyncadd [#allocation7], %s48
      %s50 = sshll.u32 [#allocation8], 4
      %s51 = int_to_ptr.vmem [resolvable:$true] %s50
      %56 = dma.hbm_to_vmem [thread:$0]  %s5, 512, %s51, [#allocation7], 128, 128, 8
    $region25: #{tpu_custom_call.1} parent=1 // pred_fallthru
      _
    // Predicated region
    $region26: #{tpu_custom_call.1} parent=1 // pred_check
      _
    $region27: #{tpu_custom_call.1} parent=1 // pred_check_branch
      %58 = sbr.rel (0) target = $region29
    $region28: #{tpu_custom_call.1} parent=1 // pred_region
      _
    $region29: #{tpu_custom_call.1} parent=1 // pred_fallthru
      _
    // Predicated region
    $region30: #{tpu_custom_call.1} parent=1 // pred_check
      _
    $region31: #{tpu_custom_call.1} parent=1 // pred_check_branch
      %60 = sbr.rel (0) target = $region33
    $region32: #{tpu_custom_call.1} parent=1 // pred_region
      %61 = dma.done [#allocation4], 384
    $region33: #{tpu_custom_call.1} parent=1 // pred_fallthru
      _
    // Predicated region
    $region34: #{tpu_custom_call.1} parent=1 // pred_check
      _
    $region35: #{tpu_custom_call.1} parent=1 // pred_check_branch
      %63 = sbr.rel (0) target = $region37
    $region36: #{tpu_custom_call.1} parent=1 // pred_region
      %64 = dma.done [#allocation7], 512
    $region37: #{tpu_custom_call.1} parent=1 // pred_fallthru
      _
    // Predicated region
    $region38: #{tpu_custom_call.1} parent=1 // pred_check
      _
    $region39: #{tpu_custom_call.1} parent=1 // pred_check_branch
      %66 = sbr.rel (0) target = $region41
    $region40: #{tpu_custom_call.1} parent=1 // pred_region
      %67 = dma.done [#allocation7], 512
    $region41: #{tpu_custom_call.1} parent=1 // pred_fallthru
      _
    %p68 = scmp.eq.s32.totalorder 0, 0
    // Predicated region
    $region42: #{tpu_custom_call.1} parent=1 // pred_check
      %p69 = pneg %p68
    $region43: #{tpu_custom_call.1} parent=1 // pred_check_branch
      %71 = sbr.rel (%p69) target = $region45
    $region44: #{tpu_custom_call.1} parent=1 // pred_region
      %vm72 = vcmask 261120
      %73 = vst.msk [vmem:[#allocation2] sm:$0xff] %vm72, 0.0
    $region45: #{tpu_custom_call.1} parent=1 // pred_fallthru
      _
    %s74 = smul.u32 0, 24
    %v75 = vlaneseq
    %v76 = vand.u32 %v75, 127
    %v77 = vstv %s74
    %v78 = vadd.s32 %v77, %v76
    %v79 = vld [vmem:[%s0] sm:$0xff]
    %80 = vset.pattern.permute.xlu0 0
    %81 = vperm.xlu0 %80, %v79
    %v82 = vpop.permute.xlu0 %81
    %vm83 = vcmp.ge.s32.totalorder %v78, %v82
    %v84 = vld [vmem:[%s1] sm:$0xff]
    %85 = vset.pattern.permute.xlu0 0
    %86 = vperm.xlu0 %85, %v84
    %v87 = vpop.permute.xlu0 %86
    %vm88 = vcmp.le.s32.totalorder %v78, %v87
    %vm89 = vmand %vm83, %vm88
    %v90 = vsel %vm89, 1, 0
    %v91 = vcvt.s32.f32 %v90
    %v92 = vld [vmem:[#allocation3] sm:$0xff]
    %v93 = vld [vmem:[#allocation3 + $0x8] sm:$0xff]
    %v94 = vld [vmem:[#allocation3 + $0x10] sm:$0xff]
    %v95 = vld [vmem:[#allocation2] sm:$0xff]
    %vm96 = vcmask 195584
    %v98 = vsel %vm96, %v91, 0
    %100 = vmatprep.subr.mxu0 0.0
    %101 = vmatpush1.msra.mxu0 0.0
    %102 = vmatprep.subr.mxu0 0.0
    %103 = vmatpush1.msra.mxu0 0.0
    %104 = vmatprep.subr.mxu0 0.0
    %105 = vmatpush1.msra.mxu0 0.0
    %106 = vmatprep.subr.mxu0 0.0
    %107 = vmatpush1.msra.mxu0 0.0
    %108 = vmatprep.subr.mxu0 0.0
    %109 = vmatpush1.msra.mxu0 0.0
    %110 = vmatprep.subr.mxu0 0.0
    %111 = vmatpush1.msra.mxu0 0.0
    %112 = vmatprep.subr.mxu0 0.0
    %113 = vmatpush1.msra.mxu0 0.0
    %114 = vmatprep.subr.mxu0 0.0
    %115 = vmatpush1.msra.mxu0 0.0
    %116 = vmatprep.subr.mxu0 0.0
    %117 = vmatpush1.msra.mxu0 0.0
    %118 = vmatprep.subr.mxu0 0.0
    %119 = vmatpush1.msra.mxu0 0.0
    %120 = vmatprep.subr.mxu0 0.0
    %121 = vmatpush1.msra.mxu0 0.0
    %122 = vmatprep.subr.mxu0 0.0
    %123 = vmatpush1.msra.mxu0 0.0
    %124 = vmatprep.subr.mxu0 0.0
    %125 = vmatpush1.msra.mxu0 0.0
    %126 = vmatprep.subr.mxu0 0.0
    %127 = vmatpush1.msra.mxu0 %v94
    %128 = vmatprep.subr.mxu0 0.0
    %129 = vmatpush1.msra.mxu0 %v93
    %130 = vmatprep.subr.mxu0 0.0
    %131 = vmatpush1.msra.mxu0 %v92
    %132 = vmatprep.subr.mxu0 0.0
    %133 = vmatpush2.msra.mxu0 0.0
    %134 = vmatprep.subr.mxu0 0.0
    %135 = vmatpush2.msra.mxu0 0.0
    %136 = vmatprep.subr.mxu0 0.0
    %137 = vmatpush2.msra.mxu0 0.0
    %138 = vmatprep.subr.mxu0 0.0
    %139 = vmatpush2.msra.mxu0 0.0
    %140 = vmatprep.subr.mxu0 0.0
    %141 = vmatpush2.msra.mxu0 0.0
    %142 = vmatprep.subr.mxu0 0.0
    %143 = vmatpush2.msra.mxu0 0.0
    %144 = vmatprep.subr.mxu0 0.0
    %145 = vmatpush2.msra.mxu0 0.0
    %146 = vmatprep.subr.mxu0 0.0
    %147 = vmatpush2.msra.mxu0 0.0
    %148 = vmatprep.subr.mxu0 0.0
    %149 = vmatpush2.msra.mxu0 0.0
    %150 = vmatprep.subr.mxu0 0.0
    %151 = vmatpush2.msra.mxu0 0.0
    %152 = vmatprep.subr.mxu0 0.0
    %153 = vmatpush2.msra.mxu0 0.0
    %154 = vmatprep.subr.mxu0 0.0
    %155 = vmatpush2.msra.mxu0 0.0
    %156 = vmatprep.subr.mxu0 0.0
    %157 = vmatpush2.msra.mxu0 0.0
    %158 = vmatprep.subr.mxu0 0.0
    %159 = vmatpush2.msra.mxu0 0.0
    %160 = vmatprep.subr.mxu0 0.0
    %161 = vmatpush2.msra.mxu0 0.0
    %162 = vmatprep.subr.mxu0 0.0
    %163 = vmatpush2.msra.mxu0 0.0
    %164 = vmatprep.mubr.f32.mxu0 0.0
    %165 = vmatmul.mubr.f32.gmra.mxu0 %v98
    %v166 = vpop.f32.mrf.mxu0
    %v167 = vadd.f32 0.0, %v166
    %v168 = vpop.f32.mrf.mxu0
    %169 = vdwg.mxu0
    %v170 = vadd.f32 %v95, %v167
    %vm171 = vcmask 261120
    %172 = vst.msk [vmem:[#allocation2] sm:$0xff] %vm171, %v170
    // Predicated region
    $region46: #{tpu_custom_call.1} parent=1 // pred_check
      %p173 = pneg %p68
    $region47: #{tpu_custom_call.1} parent=1 // pred_check_branch
      %175 = sbr.rel (%p173) target = $region49
    $region48: #{tpu_custom_call.1} parent=1 // pred_region
      %v176 = vld [vmem:[#allocation2] sm:$0xff]
      %v177 = vld [vmem:[#allocation6] sm:$0xff]
      %v178 = vld [vmem:[#allocation6 + $0x8] sm:$0xff]
      %v179 = vld [vmem:[#allocation6 + $0x10] sm:$0xff]
      %v180 = vld [vmem:[#allocation6 + $0x18] sm:$0xff]
      %v181 = vld [vmem:[%s4] sm:$0x1]
      %v183 = vlaneseq
      %v184 = vshrl.u32 %v183, 7
      %v185 = vsub.s32 0, %v184
      %v186 = vrot.slane %v181, %v185
      %v189 = vsel %vm171, %v176, 0
      %191 = vmatprep.subr.mxu0 0.0
      %192 = vmatpush1.msra.mxu0 0.0
      %193 = vmatprep.subr.mxu0 0.0
      %194 = vmatpush1.msra.mxu0 0.0
      %195 = vmatprep.subr.mxu0 0.0
      %196 = vmatpush1.msra.mxu0 0.0
      %197 = vmatprep.subr.mxu0 0.0
      %198 = vmatpush1.msra.mxu0 0.0
      %199 = vmatprep.subr.mxu0 0.0
      %200 = vmatpush1.msra.mxu0 0.0
      %201 = vmatprep.subr.mxu0 0.0
      %202 = vmatpush1.msra.mxu0 0.0
      %203 = vmatprep.subr.mxu0 0.0
      %204 = vmatpush1.msra.mxu0 0.0
      %205 = vmatprep.subr.mxu0 0.0
      %206 = vmatpush1.msra.mxu0 0.0
      %207 = vmatprep.subr.mxu0 0.0
      %208 = vmatpush1.msra.mxu0 0.0
      %209 = vmatprep.subr.mxu0 0.0
      %210 = vmatpush1.msra.mxu0 0.0
      %211 = vmatprep.subr.mxu0 0.0
      %212 = vmatpush1.msra.mxu0 0.0
      %213 = vmatprep.subr.mxu0 0.0
      %214 = vmatpush1.msra.mxu0 0.0
      %215 = vmatprep.subr.mxu0 0.0
      %216 = vmatpush1.msra.mxu0 %v180
      %217 = vmatprep.subr.mxu0 0.0
      %218 = vmatpush1.msra.mxu0 %v179
      %219 = vmatprep.subr.mxu0 0.0
      %220 = vmatpush1.msra.mxu0 %v178
      %221 = vmatprep.subr.mxu0 0.0
      %222 = vmatpush1.msra.mxu0 %v177
      %223 = vmatprep.subr.mxu0 0.0
      %224 = vmatpush2.msra.mxu0 0.0
      %225 = vmatprep.subr.mxu0 0.0
      %226 = vmatpush2.msra.mxu0 0.0
      %227 = vmatprep.subr.mxu0 0.0
      %228 = vmatpush2.msra.mxu0 0.0
      %229 = vmatprep.subr.mxu0 0.0
      %230 = vmatpush2.msra.mxu0 0.0
      %231 = vmatprep.subr.mxu0 0.0
      %232 = vmatpush2.msra.mxu0 0.0
      %233 = vmatprep.subr.mxu0 0.0
      %234 = vmatpush2.msra.mxu0 0.0
      %235 = vmatprep.subr.mxu0 0.0
      %236 = vmatpush2.msra.mxu0 0.0
      %237 = vmatprep.subr.mxu0 0.0
      %238 = vmatpush2.msra.mxu0 0.0
      %239 = vmatprep.subr.mxu0 0.0
      %240 = vmatpush2.msra.mxu0 0.0
      %241 = vmatprep.subr.mxu0 0.0
      %242 = vmatpush2.msra.mxu0 0.0
      %243 = vmatprep.subr.mxu0 0.0
      %244 = vmatpush2.msra.mxu0 0.0
      %245 = vmatprep.subr.mxu0 0.0
      %246 = vmatpush2.msra.mxu0 0.0
      %247 = vmatprep.subr.mxu0 0.0
      %248 = vmatpush2.msra.mxu0 0.0
      %249 = vmatprep.subr.mxu0 0.0
      %250 = vmatpush2.msra.mxu0 0.0
      %251 = vmatprep.subr.mxu0 0.0
      %252 = vmatpush2.msra.mxu0 0.0
      %253 = vmatprep.subr.mxu0 0.0
      %254 = vmatpush2.msra.mxu0 0.0
      %255 = vmatprep.mubr.f32.mxu0 0.0
      %256 = vmatmul.mubr.f32.gmra.mxu0 %v189
      %v257 = vpop.f32.mrf.mxu0
      %v258 = vadd.f32 %v186, %v257
      %v259 = vpop.f32.mrf.mxu0
      %260 = vdwg.mxu0
      %v261 = vand.u32 2147483647, %v258
      %v262 = vsub.f32 0.0, %v261
      %v263 = vmul.f32 %v262, 1.442695
      %v264 = vpow.pop %v263
      %v265 = vadd.f32 %v264, 1.0
      %v266 = vlog2.pop %v265
      %v267 = vmul.f32 %v266, 0.6931472
      %v268 = vmul.f32 -0.5, %v264
      %v269 = vadd.f32 %v268, 1.0
      %v270 = vmul.f32 %v269, %v264
      %v271 = vand.u32 2147483647, %v264
      %vm272 = vcmp.lt.f32.partialorder %v271, 0.0004427343
      %v273 = vsel %vm272, %v270, %v267
      %v274 = vmax.f32 %v258, 0.0
      %v275 = vadd.f32 %v273, %v274
      %v276 = vtanh.pop %v275
      %v277 = vmul.f32 %v258, %v276
      %v278 = vld [vmem:[#allocation8] sm:$0xff]
      %v279 = vld [vmem:[#allocation8 + $0x8] sm:$0xff]
      %v280 = vld [vmem:[#allocation8 + $0x10] sm:$0xff]
      %v281 = vld [vmem:[#allocation8 + $0x18] sm:$0xff]
      %v282 = vld [vmem:[%s6] sm:$0x1]
      %v284 = vlaneseq
      %v285 = vshrl.u32 %v284, 7
      %v286 = vsub.s32 0, %v285
      %v287 = vrot.slane %v282, %v286
      %v290 = vsel %vm171, %v277, 0
      %292 = vmatprep.subr.mxu0 0.0
      %293 = vmatpush1.msra.mxu0 0.0
      %294 = vmatprep.subr.mxu0 0.0
      %295 = vmatpush1.msra.mxu0 0.0
      %296 = vmatprep.subr.mxu0 0.0
      %297 = vmatpush1.msra.mxu0 0.0
      %298 = vmatprep.subr.mxu0 0.0
      %299 = vmatpush1.msra.mxu0 0.0
      %300 = vmatprep.subr.mxu0 0.0
      %301 = vmatpush1.msra.mxu0 0.0
      %302 = vmatprep.subr.mxu0 0.0
      %303 = vmatpush1.msra.mxu0 0.0
      %304 = vmatprep.subr.mxu0 0.0
      %305 = vmatpush1.msra.mxu0 0.0
      %306 = vmatprep.subr.mxu0 0.0
      %307 = vmatpush1.msra.mxu0 0.0
      %308 = vmatprep.subr.mxu0 0.0
      %309 = vmatpush1.msra.mxu0 0.0
      %310 = vmatprep.subr.mxu0 0.0
      %311 = vmatpush1.msra.mxu0 0.0
      %312 = vmatprep.subr.mxu0 0.0
      %313 = vmatpush1.msra.mxu0 0.0
      %314 = vmatprep.subr.mxu0 0.0
      %315 = vmatpush1.msra.mxu0 0.0
      %316 = vmatprep.subr.mxu0 0.0
      %317 = vmatpush1.msra.mxu0 %v281
      %318 = vmatprep.subr.mxu0 0.0
      %319 = vmatpush1.msra.mxu0 %v280
      %320 = vmatprep.subr.mxu0 0.0
      %321 = vmatpush1.msra.mxu0 %v279
      %322 = vmatprep.subr.mxu0 0.0
      %323 = vmatpush1.msra.mxu0 %v278
      %324 = vmatprep.subr.mxu0 0.0
      %325 = vmatpush2.msra.mxu0 0.0
      %326 = vmatprep.subr.mxu0 0.0
      %327 = vmatpush2.msra.mxu0 0.0
      %328 = vmatprep.subr.mxu0 0.0
      %329 = vmatpush2.msra.mxu0 0.0
      %330 = vmatprep.subr.mxu0 0.0
      %331 = vmatpush2.msra.mxu0 0.0
      %332 = vmatprep.subr.mxu0 0.0
      %333 = vmatpush2.msra.mxu0 0.0
      %334 = vmatprep.subr.mxu0 0.0
      %335 = vmatpush2.msra.mxu0 0.0
      %336 = vmatprep.subr.mxu0 0.0
      %337 = vmatpush2.msra.mxu0 0.0
      %338 = vmatprep.subr.mxu0 0.0
      %339 = vmatpush2.msra.mxu0 0.0
      %340 = vmatprep.subr.mxu0 0.0
      %341 = vmatpush2.msra.mxu0 0.0
      %342 = vmatprep.subr.mxu0 0.0
      %343 = vmatpush2.msra.mxu0 0.0
      %344 = vmatprep.subr.mxu0 0.0
      %345 = vmatpush2.msra.mxu0 0.0
      %346 = vmatprep.subr.mxu0 0.0
      %347 = vmatpush2.msra.mxu0 0.0
      %348 = vmatprep.subr.mxu0 0.0
      %349 = vmatpush2.msra.mxu0 0.0
      %350 = vmatprep.subr.mxu0 0.0
      %351 = vmatpush2.msra.mxu0 0.0
      %352 = vmatprep.subr.mxu0 0.0
      %353 = vmatpush2.msra.mxu0 0.0
      %354 = vmatprep.subr.mxu0 0.0
      %355 = vmatpush2.msra.mxu0 0.0
      %356 = vmatprep.mubr.f32.mxu0 0.0
      %357 = vmatmul.mubr.f32.gmra.mxu0 %v290
      %v358 = vpop.f32.mrf.mxu0
      %v359 = vadd.f32 %v287, %v358
      %v360 = vpop.f32.mrf.mxu0
      %361 = vdwg.mxu0
      %362 = vst [vmem:[#allocation9] sm:$0xff] %v359
    $region49: #{tpu_custom_call.1} parent=1 // pred_fallthru
      _
    // Predicated region
    $region50: #{tpu_custom_call.1} parent=1 // pred_check
      _
    $region51: #{tpu_custom_call.1} parent=1 // pred_check_branch
      %364 = sbr.rel (0) target = $region53
    $region52: #{tpu_custom_call.1} parent=1 // pred_region
      %s366 = ssub.s32 128, 128
      %367 = vsyncadd [#allocation5], %s366
      %s369 = sshll.u32 [#allocation9], 4
      %s370 = int_to_ptr.vmem [resolvable:$true] %s369
      %372 = dma.vmem_to_hbm [thread:$0]  %s370, 128, %s7, [#allocation5]
    $region53: #{tpu_custom_call.1} parent=1 // pred_fallthru
      _
    // Predicated region
    $region54: #{tpu_custom_call.1} parent=1 // pred_check
      _
    $region55: #{tpu_custom_call.1} parent=1 // pred_check_branch
      %374 = sbr.rel (0) target = $region57
    $region56: #{tpu_custom_call.1} parent=1 // pred_region
      %375 = dma.done [#allocation5], 128
    $region57: #{tpu_custom_call.1} parent=1 // pred_fallthru
      _
    %376 = vsyncpa [#allocation4], 1
    %377 = vsyncpa [#allocation7], 1
    %378 = vsyncpa [#allocation5], 1

</llo_original>
